<compile_context>
chip_gen: v7x
topology: tpu7x:2x2x1
jax: 0.10.0
libtpu: 0.0.40
codegen_flags: <defaults>
</compile_context>

<pallas_src>
import functools
import math

import jax
import jax.numpy as jnp
from jax import lax
from jax.experimental import pallas as pl
from jax.experimental.pallas import tpu as pltpu


def _round_up(x, m):
    return ((x + m - 1) // m) * m


def _round_down(x, m):
    return (x // m) * m


def _xent_kernel(lp_ref, t_ref, out_ref, *, pad_index, smoothing, vocab_size,
                 tv, num_v_blocks, mask_cols, use_mxu):
    multi_v = num_v_blocks > 1
    vj = pl.program_id(1)

    if multi_v:
        @pl.when(vj == 0)
        def _():
            out_ref[...] = jnp.zeros_like(out_ref)

    lp = lp_ref[...].astype(jnp.float32)           # (bn, tv) log-prob tile
    tgt = t_ref[...]                               # (bn, 1) int32 targets

    non_pad = tgt != pad_index                     # (bn, 1) rows that count
    col = lax.broadcasted_iota(jnp.int32, lp.shape, 1)
    local_tgt = (tgt - vj * tv) if multi_v else tgt
    is_tgt = col == local_tgt                      # (bn, tv) one-hot of target

    if smoothing > 0.0:
        uni = float(smoothing) / float(vocab_size - 2)
        # Per-non-pad-row constant sum_c p*log(p), computed at trace time.
        const_row = smoothing * math.log(uni)
        if smoothing < 1.0:
            const_row += (1.0 - smoothing) * math.log(1.0 - smoothing)

        pad_tile = pad_index // tv
        pad_local = pad_index % tv

        if mask_cols:
            # Ragged last V tile: zero OOB columns element-wise (NaN-safe
            # select) BEFORE any lane reduction.  Row masking stays row-level.
            lp_c = jnp.where((col + vj * tv) < vocab_size, lp, 0.0)
        else:
            lp_c = lp

        # ---- row-level reductions over the vocab tile ----------------------
        row_tgt = jnp.sum(jnp.where(is_tgt, lp_c, 0.0), axis=1, keepdims=True)
        if use_mxu:
            # Lane reduction on the (otherwise idle) MXU instead of VALU
            # accumulate adds: row sums = lp_c @ ones.
            ones_rhs = jnp.full((tv, 128), 1.0, dtype=jnp.float32)
            row_sum = jnp.dot(lp_c, ones_rhs,
                              preferred_element_type=jnp.float32)[:, 0:1]
        else:
            row_sum = jnp.sum(lp_c, axis=1, keepdims=True)
        row_pad = lp_c[:, pad_local:pad_local + 1]         # static lane slice
        if multi_v:
            # Select (not multiply): NaN/inf-safe on tiles that do not hold
            # the pad column.
            row_pad = jnp.where(vj == pad_tile, row_pad, 0.0)

        # p . lp per row, then a single row-level select masks pad/OOB rows
        # before anything reaches the scalar sum (NaN-safe).
        row_val = uni * (row_sum - row_pad) + (1.0 - smoothing - uni) * row_tgt
        p_dot_lp = jnp.sum(jnp.where(non_pad, row_val, 0.0))

        n_nonpad = jnp.sum(jnp.where(non_pad, 1.0, 0.0))
        if multi_v:
            n_nonpad = jnp.where(vj == 0, n_nonpad, 0.0)   # count rows once
        partial = const_row * n_nonpad - p_dot_lp
    else:
        # NLL(sum, ignore_index=pad): -lp at the target column on non-pad rows.
        # is_tgt can never select an OOB column (targets < vocab), so no column
        # mask is needed; row mask is a (bn,1) select.
        row_tgt = jnp.sum(jnp.where(is_tgt, lp, 0.0), axis=1, keepdims=True)
        partial = -jnp.sum(jnp.where(non_pad, row_tgt, 0.0))

    if multi_v:
        out_ref[...] += partial                    # resident across the V axis
    else:
        out_ref[...] = jnp.zeros_like(out_ref) + partial


def xent_loss_pallas(log_probs, targets, pad_index, smoothing=0.0,
                     block_n=None, tv=None, use_mxu=None):
    """Forward pass of XentLoss. Returns a scalar f32 loss.

    log_probs may be f32 or bf16 (cast to f32 inside the kernel).
    """
    v = log_probs.shape[-1]
    lp = log_probs.reshape(-1, v)
    t = targets.reshape(-1).astype(jnp.int32)
    n = lp.shape[0]
    itemsize = jnp.dtype(lp.dtype).itemsize

    # ---- device info (VMEM capacity), with a safe fallback -----------------
    try:
        vmem_cap = int(getattr(pltpu.get_tpu_info(), "vmem_capacity_bytes",
                               128 * 2**20))
    except Exception:
        vmem_cap = 128 * 2**20

    # HBM bytes per lp tile, sized by the ACTUAL itemsize (bf16-aware).
    # 4 MiB is past the measured ~85% roofline knee on v5e/v6e; use 8 MiB on
    # small-VMEM / high-bandwidth chips (v7x) where per-step overhead is a
    # larger fraction of the tile drain time.
    tile_budget = 8 * 2**20 if vmem_cap <= 64 * 2**20 else 4 * 2**20

    # ---- V tiling: prefer a single V tile whenever >= 8 rows fit -----------
    if tv is None:
        tv = v if 8 * v * itemsize <= tile_budget else 2048   # 2048 % 128 == 0
    grid_v = pl.cdiv(v, tv)
    mask_cols = (v % tv) != 0

    # ---- row tiling ---------------------------------------------------------
    if block_n is None:
        rows = tile_budget // (tv * itemsize)
        block_n = max(8, min(2048, _round_down(rows, 8)))
    block_n = max(8, _round_up(block_n, 8))
    block_n = min(block_n, _round_up(n, 8))
    if n > 8:
        # Guarantee >= 2 (balanced) row blocks so the "parallel" row axis can
        # actually split across both v7x TensorCores.
        block_n = min(block_n, _round_up((n + 1) // 2, 8))
    grid_r = pl.cdiv(n, block_n)

    if use_mxu is None:
        # MXU lane-reduction only pays once the per-step ones-RHS splat
        # amortizes over many rows (VALU-bound regime: v7x, bf16-on-v6e).
        use_mxu = (smoothing > 0.0) and (block_n >= 512) and (tv >= 512)

    # Pad ONLY the tiny targets array so OOB rows carry target == pad_index and
    # are row-masked in-kernel.  log_probs is never copied.
    n_pad = grid_r * block_n
    if n_pad != n:
        t = jnp.pad(t, (0, n_pad - n), constant_values=pad_index)
    t2 = t[:, None]

    kernel = functools.partial(
        _xent_kernel,
        pad_index=int(pad_index),
        smoothing=float(smoothing),
        vocab_size=int(v),
        tv=int(tv),
        num_v_blocks=int(grid_v),
        mask_cols=bool(mask_cols),
        use_mxu=bool(use_mxu),
    )

    tile_bytes = block_n * tv * itemsize
    # Clamp the scoped-VMEM request to the device (v7x has only 64 MiB).
    vmem_limit = int(min(0.75 * vmem_cap,
                         max(32 * 2**20, 6 * tile_bytes + 4 * 2**20)))

    out = pl.pallas_call(
        kernel,
        out_shape=jax.ShapeDtypeStruct((grid_r, 8, 128), jnp.float32),
        grid_spec=pltpu.PrefetchScalarGridSpec(
            num_scalar_prefetch=0,
            grid=(grid_r, grid_v),                # reduction (V) axis innermost
            in_specs=[
                pl.BlockSpec((block_n, tv), lambda ri, vj: (ri, vj)),
                pl.BlockSpec((block_n, 1), lambda ri, vj: (ri, 0)),
            ],
            out_specs=pl.BlockSpec((1, 8, 128), lambda ri, vj: (ri, 0, 0)),
        ),
        compiler_params=pltpu.CompilerParams(
            dimension_semantics=("parallel", "arbitrary"),
            vmem_limit_bytes=vmem_limit),
    )(lp, t2)

    # Per-row-block partials -> final scalar reduction in the wrapper.
    return jnp.sum(out[:, 0, 0])


def xent_loss_ref(log_probs, targets, pad_index, smoothing=0.0):
    """Pure-JAX reference matching the PyTorch semantics."""
    v = log_probs.shape[-1]
    lp = log_probs.reshape(-1, v).astype(jnp.float32)
    t = targets.reshape(-1)
    if smoothing > 0.0:
        onehot = jax.nn.one_hot(t, v, dtype=jnp.float32)
        p = jnp.where(onehot > 0, 1.0 - smoothing, smoothing / (v - 2))
        p = p.at[:, pad_index].set(0.0)
        p = jnp.where((t == pad_index)[:, None], 0.0, p)
        logp = jnp.where(p > 0, jnp.log(jnp.maximum(p, 1e-30)), 0.0)
        return jnp.sum(jnp.where(p > 0, p * (logp - lp), 0.0))
    picked = jnp.take_along_axis(lp, t[:, None], axis=1)[:, 0]
    return -jnp.sum(jnp.where(t == pad_index, 0.0, picked))


def _make_inputs(key, batch, seq, vocab, pad_index, dtype=jnp.float32):
    k1, k2, k3 = jax.random.split(key, 3)
    logits = jax.random.normal(k1, (batch, seq, vocab), dtype=jnp.float32)
    log_probs = jax.nn.log_softmax(logits, axis=-1).astype(dtype)
    targets = jax.random.randint(k2, (batch, seq), 0, vocab, dtype=jnp.int32)
    pad_mask = jax.random.bernoulli(k3, 0.25, (batch, seq))
    targets = jnp.where(pad_mask, pad_index, targets)
    return log_probs, targets


if __name__ == "__main__":
    key = jax.random.PRNGKey(0)
    ok = True

    configs = [
        # (batch, seq, vocab, pad_index, dtype, kwargs)
        (2, 8, 32, 1, jnp.float32, {}),                 # single V tile, tiny
        (3, 5, 40, 0, jnp.float32, {}),                 # ragged rows -> OOB-row masking
        (2, 8, 200, 3, jnp.float32, {"tv": 128}),       # forced V tiling -> col mask + pad gating
        (2, 8, 256, 2, jnp.float32, {"use_mxu": True}), # MXU lane-reduction path
        (4, 16, 512, 1, jnp.bfloat16, {}),              # bf16 input, dtype-aware tiling
    ]

    for idx, (batch, seq, vocab, pad_index, dtype, kwargs) in enumerate(configs):
        key, sub = jax.random.split(key)
        log_probs, targets = _make_inputs(sub, batch, seq, vocab, pad_index, dtype)
        for smoothing in (0.0, 0.1):
            loss = jax.block_until_ready(
                xent_loss_pallas(log_probs, targets, pad_index, smoothing, **kwargs))
            ref = xent_loss_ref(log_probs, targets, pad_index, smoothing)
            if not jnp.allclose(loss, ref, rtol=1e-4, atol=1e-2):
                ok = False
                print(f"mismatch cfg={idx} smoothing={smoothing}: {loss} vs {ref}")

    if ok:
        print("KERNEL_OK")
</pallas_src>

<mosaic_0001>
module attributes {stable_mosaic.version = 11 : i64} {
  func.func @_xent_kernel(%arg0: i32, %arg1: i32, %arg2: memref<8x32xf32, #tpu.memory_space<vmem>>, %arg3: memref<8x1xi32, #tpu.memory_space<vmem>>, %arg4: memref<1x8x128xf32, #tpu.memory_space<vmem>>) attributes {dimension_semantics = [#tpu.dimension_semantics<parallel>, #tpu.dimension_semantics<arbitrary>], iteration_bounds = array<i64: 2, 1>, scalar_prefetch = 0 : i64, scratch_operands = 0 : i64, tpu.core_type = #tpu.core_type<tc>, window_params = [{transform_indices = @transform_0, window_bounds = array<i64: 8, 32>}, {transform_indices = @transform_1, window_bounds = array<i64: 8, 1>}, {transform_indices = @transform_2, window_bounds = array<i64: 1, 8, 128>}]} {
    %c0 = arith.constant 0 : index
    %c0_0 = arith.constant 0 : index
    %0 = vector.load %arg2[%c0, %c0_0] : memref<8x32xf32, #tpu.memory_space<vmem>>, vector<8x32xf32>
    %c0_1 = arith.constant 0 : index
    %c0_2 = arith.constant 0 : index
    %1 = vector.load %arg3[%c0_1, %c0_2] : memref<8x1xi32, #tpu.memory_space<vmem>>, vector<8x1xi32>
    %c1_i32 = arith.constant 1 : i32
    %2 = vector.broadcast %c1_i32 : i32 to vector<8x1xi32>
    %3 = arith.cmpi ne, %1, %2 : vector<8x1xi32>
    %4 = tpu.iota {dimensions = array<i32: 1>} : vector<8x32xi32>
    %5 = vector.broadcast %1 : vector<8x1xi32> to vector<8x32xi32>
    %6 = arith.cmpi eq, %4, %5 : vector<8x32xi32>
    %cst = arith.constant 0.000000e+00 : f32
    %7 = vector.broadcast %cst : f32 to vector<8x32xf32>
    %8 = arith.select %6, %0, %7 : vector<8x32xi1>, vector<8x32xf32>
    %cst_3 = arith.constant dense<0.000000e+00> : vector<8xf32>
    %9 = vector.multi_reduction <add>, %8, %cst_3 [1] : vector<8x32xf32> to vector<8xf32>
    %10 = vector.shape_cast %9 : vector<8xf32> to vector<8x1xf32>
    %cst_4 = arith.constant 0.000000e+00 : f32
    %11 = vector.broadcast %cst_4 : f32 to vector<8x1xf32>
    %12 = arith.select %3, %10, %11 : vector<8x1xi1>, vector<8x1xf32>
    %13 = vector.shape_cast %12 : vector<8x1xf32> to vector<1x8x1xf32>
    %cst_5 = arith.constant dense<0.000000e+00> : vector<1xf32>
    %14 = vector.multi_reduction <add>, %13, %cst_5 [1, 2] : vector<1x8x1xf32> to vector<1xf32>
    %15 = vector.shape_cast %14 : vector<1xf32> to vector<1x1x1xf32>
    %16 = vector.extract %15[0, 0, 0] : f32 from vector<1x1x1xf32>
    %cst_6 = arith.constant 0.000000e+00 : f32
    %17 = arith.subf %cst_6, %16 : f32
    %cst_7 = arith.constant 0.000000e+00 : f32
    %18 = vector.broadcast %cst_7 : f32 to vector<1x8x128xf32>
    %19 = vector.broadcast %17 : f32 to vector<1x8x128xf32>
    %20 = arith.addf %18, %19 : vector<1x8x128xf32>
    %c0_8 = arith.constant 0 : index
    %c0_9 = arith.constant 0 : index
    %c0_10 = arith.constant 0 : index
    %21 = vector.load %arg4[%c0_8, %c0_9, %c0_10] : memref<1x8x128xf32, #tpu.memory_space<vmem>>, vector<1x8x128xf32>
    tpu.vector_store %arg4[%c0_8, %c0_9, %c0_10], %20 {strides = array<i32>} : memref<1x8x128xf32, #tpu.memory_space<vmem>>, vector<1x8x128xf32>,
    return
  }
  func.func @transform_0(%arg0: i32, %arg1: i32) -> (i32, i32) {
    %c0_i32 = arith.constant 0 : i32
    return %arg0, %arg1 : i32, i32
  }
  func.func @transform_1(%arg0: i32, %arg1: i32) -> (i32, i32) {
    %c0_i32 = arith.constant 0 : i32
    %c0_i32_0 = arith.constant 0 : i32
    return %arg0, %c0_i32 : i32, i32
  }
  func.func @transform_2(%arg0: i32, %arg1: i32) -> (i32, i32, i32) {
    %c0_i32 = arith.constant 0 : i32
    %c0_i32_0 = arith.constant 0 : i32
    %c0_i32_1 = arith.constant 0 : i32
    return %arg0, %c0_i32, %c0_i32_0 : i32, i32, i32
  }
}

</mosaic_0001>

<llo_original>
// kernel: tpu_custom_call.1
$region0: #{tpu_custom_call.1}
  #allocation0 [shape = 'u32[]', space=smem, size = 0x4, offset = 0x4, fixed_abs, tag = 'smem constant byte address 0x4 - core index']
  #allocation1 [shape = 'u32[144,128]{1,0:T(1,128)}', space=vmem, size = 0x12000, scoped, tag = 'internal scratch']
  %s0 = inlined_call_operand.vmem [shape: f32[16,32], index: 0, kind: input, shape index: {}]
  %s1 = inlined_call_operand.vmem [shape: s32[16,1], index: 1, kind: input, shape index: {}]
  %s2 = inlined_call_operand.hbm [shape: f32[2,8,128], index: 2, kind: output, shape index: {}]
  %s3 = sld [smem:[#allocation0]]
  $region41: #{tpu_custom_call.1} parent=0
    _
  %s5 = ssub.s32 1, %s3
  %s6 = scalar_select 0, %s5, %s3
  $region1: #{tpu_custom_call.1} parent=0
    #allocation2 [shape = 'u8[8192]{0}', space=vmem, size = 0x2000, scoped, tag = 'output window, operand 0']
    #allocation3 [shape = 's32[2]{0}', space=sflag, size = 0x8, scoped, tag = 'scoped memory for tpu_custom_call.1']
    %7 = vsyncpa [#allocation3], 0
    %s8 = scalar_lea.sflag [#allocation3], 1
    %9 = vsyncpa %s8, 0
    loop: start=0, step=1, limit=4
    $region2: #{tpu_custom_call.1} parent=1 // loop_pre_header
      _
    $region3: #{tpu_custom_call.1} parent=1 // loop_header
      %s11 = sphi 0, %s15
      %p12 = scmp.ge.s32.totalorder %s11, 4
      %s18 = sphi 0, %s30
      %s19 = sphi 0, %s26
      %s20 = sphi 0, %s18
      %s21 = sphi 0, %s19
      %s22 = sphi 0, %s20
      %s23 = sphi 0, %s21
      %s35 = sphi 0, %s37
      %s38 = sphi 0, %s35
      %s39 = sphi 0, %s38
      %s55 = sphi 0, %s39
      %s61 = sphi 0, %s63
      %s64 = sphi 0, %s61
      %s65 = sphi 0, %s64
      %s81 = sphi 0, %s65
      %s87 = sphi 0, %s89
      %s90 = sphi 0, %s87
      %s91 = sphi 0, %s90
      %s107 = sphi 0, %s91
    $region4: #{tpu_custom_call.1} parent=1 // loop_header_branch
      %14 = sbr.rel (%p12) target = $region8
    $region5: #{tpu_custom_call.1} parent=1 // loop_body
      %s16 = ssub.s32 %s11, 1
      %s17 = ssub.s32 %s11, 2
      %s24 = sadd.s32 1, %s19
      %p25 = scmp.ge.s32.totalorder %s24, 1
      %s26 = scalar_select %p25, 0, %s24
      %s27 = sadd.s32 1, %s18
      %s28 = scalar_select %p25, %s27, %s18
      %p29 = scmp.ge.s32.totalorder %s28, 2
      %s30 = scalar_select %p29, 0, %s28
      %s31 = ssub.s32 %s18, %s30
      %s32 = ssub.s32 %s19, %s26
      %s33 = sor.u32 %s31, %s32
      %p34 = scmp.eq.s32.totalorder %s33, 0
      %s36 = sadd.s32 %s35, 1
      %s37 = scalar_select %p34, %s35, %s36
      %p40 = pneg %p34
      %p41 = scmp.eq.s32.totalorder %s11, 1
      %p42 = por %p40, %p41
      %p43 = scmp.ne.s32.totalorder %s35, %s38
      %p44 = scmp.eq.s32.totalorder %s11, 0
      %p45 = por %p43, %p44
      %p46 = scmp.ne.s32.totalorder %s35, %s38
      %p47 = scmp.eq.s32.totalorder %s16, 1
      %p48 = por %p46, %p47
      %p49 = scmp.ne.s32.totalorder %s38, %s39
      %p50 = scmp.eq.s32.totalorder %s16, 0
      %p51 = por %p49, %p50
      %p52 = scmp.ne.s32.totalorder %s38, %s39
      %p53 = scmp.eq.s32.totalorder %s17, 1
      %p54 = por %p52, %p53
      %p56 = scmp.ne.s32.totalorder %s39, %s55
      %p57 = scmp.eq.s32.totalorder %s17, 0
      %p58 = por %p56, %p57
      %s59 = ssub.s32 %s18, %s30
      %p60 = scmp.eq.s32.totalorder %s59, 0
      %s62 = sadd.s32 %s61, 1
      %s63 = scalar_select %p60, %s61, %s62
      %p66 = pneg %p60
      %p67 = scmp.eq.s32.totalorder %s11, 1
      %p68 = por %p66, %p67
      %p69 = scmp.ne.s32.totalorder %s61, %s64
      %p70 = scmp.eq.s32.totalorder %s11, 0
      %p71 = por %p69, %p70
      %p72 = scmp.ne.s32.totalorder %s61, %s64
      %p73 = scmp.eq.s32.totalorder %s16, 1
      %p74 = por %p72, %p73
      %p75 = scmp.ne.s32.totalorder %s64, %s65
      %p76 = scmp.eq.s32.totalorder %s16, 0
      %p77 = por %p75, %p76
      %p78 = scmp.ne.s32.totalorder %s64, %s65
      %p79 = scmp.eq.s32.totalorder %s17, 1
      %p80 = por %p78, %p79
      %p82 = scmp.ne.s32.totalorder %s65, %s81
      %p83 = scmp.eq.s32.totalorder %s17, 0
      %p84 = por %p82, %p83
      %s85 = ssub.s32 %s18, %s30
      %p86 = scmp.eq.s32.totalorder %s85, 0
      %s88 = sadd.s32 %s87, 1
      %s89 = scalar_select %p86, %s87, %s88
      %p92 = pneg %p86
      %p93 = scmp.eq.s32.totalorder %s11, 1
      %p94 = por %p92, %p93
      %p95 = scmp.ne.s32.totalorder %s87, %s90
      %p96 = scmp.eq.s32.totalorder %s11, 0
      %p97 = por %p95, %p96
      %p98 = scmp.ne.s32.totalorder %s87, %s90
      %p99 = scmp.eq.s32.totalorder %s16, 1
      %p100 = por %p98, %p99
      %p101 = scmp.ne.s32.totalorder %s90, %s91
      %p102 = scmp.eq.s32.totalorder %s16, 0
      %p103 = por %p101, %p102
      %p104 = scmp.ne.s32.totalorder %s90, %s91
      %p105 = scmp.eq.s32.totalorder %s17, 1
      %p106 = por %p104, %p105
      %p108 = scmp.ne.s32.totalorder %s91, %s107
      %p109 = scmp.eq.s32.totalorder %s17, 0
      %p110 = por %p108, %p109
      %p111 = scmp.le.s32.totalorder 1, %s11
      %p112 = scmp.lt.s32.totalorder %s11, 3
      %p113 = pnand %p111, %p112
      %p114 = pneg %p113
      // Predicated region
      $region9: #{tpu_custom_call.1} parent=5 // pred_check
        _
      $region10: #{tpu_custom_call.1} parent=5 // pred_check_branch
        %116 = sbr.rel (%p113) target = $region12
      $region11: #{tpu_custom_call.1} parent=5 // pred_region
        %s117 = ssub.s32 %s11, 1
      $region12: #{tpu_custom_call.1} parent=5 // pred_fallthru
        _
      %p118 = scmp.lt.s32.totalorder %s11, 2
      // Predicated region
      $region13: #{tpu_custom_call.1} parent=5 // pred_check
        %p119 = pneg %p118
      $region14: #{tpu_custom_call.1} parent=5 // pred_check_branch
        %121 = sbr.rel (%p119) target = $region16
      $region15: #{tpu_custom_call.1} parent=5 // pred_region
        // Predicated region
        $region17: #{tpu_custom_call.1} parent=15 // pred_check
          %p122 = pneg %p45
        $region18: #{tpu_custom_call.1} parent=15 // pred_check_branch
          %124 = sbr.rel (%p122) target = $region20
        $region19: #{tpu_custom_call.1} parent=15 // pred_region
          %p125 = scmp.lt.s32.totalorder %s18, 1
          %s126 = scalar_select %p125, %s18, 1
          %p127 = scmp.lt.s32.totalorder %s19, 0
          %s128 = scalar_select %p127, %s19, 0
          %s129 = sadd.s32 %s128, %s126
          %s130 = smul.addr %s129, 8
          %s131 = scalar_lea.vmem %s0, %s130
        $region20: #{tpu_custom_call.1} parent=15 // pred_fallthru
          _
        // Predicated region
        $region21: #{tpu_custom_call.1} parent=15 // pred_check
          %p132 = pneg %p71
        $region22: #{tpu_custom_call.1} parent=15 // pred_check_branch
          %134 = sbr.rel (%p132) target = $region24
        $region23: #{tpu_custom_call.1} parent=15 // pred_region
          %p135 = scmp.lt.s32.totalorder %s18, 1
          %s136 = scalar_select %p135, %s18, 1
          %s137 = smul.addr %s136, 8
          %s138 = scalar_lea.vmem %s1, %s137
        $region24: #{tpu_custom_call.1} parent=15 // pred_fallthru
          _
      $region16: #{tpu_custom_call.1} parent=5 // pred_fallthru
        _
      %p139 = scmp.le.s32.totalorder 1, %s11
      %p140 = scmp.lt.s32.totalorder %s11, 3
      %p141 = pnand %p139, %p140
      %p142 = pneg %p141
      // Predicated region
      $region25: #{tpu_custom_call.1} parent=5 // pred_check
        _
      $region26: #{tpu_custom_call.1} parent=5 // pred_check_branch
        %144 = sbr.rel (%p141) target = $region28
      $region27: #{tpu_custom_call.1} parent=5 // pred_region
        %s145 = ssub.s32 %s11, 1
        %p146 = scmp.lt.s32.totalorder %s20, 1
        %s147 = scalar_select %p146, %s20, 1
        %p148 = scmp.lt.s32.totalorder %s21, 0
        %s149 = scalar_select %p148, %s21, 0
        %s150 = sadd.s32 %s149, %s147
        %s151 = smul.addr %s150, 8
        %s152 = scalar_lea.vmem %s0, %s151
        %p153 = pneg %p51
        %p154 = pneg %p48
        %p155 = scmp.lt.s32.totalorder %s20, 1
        %s156 = scalar_select %p155, %s20, 1
        %s157 = smul.addr %s156, 8
        %s158 = scalar_lea.vmem %s1, %s157
        %p159 = pneg %p77
        %p160 = pneg %p74
        %p161 = pneg %p103
        %p162 = pneg %p100
        %s163 = sand.u32 %s90, 1
        %s164 = scalar_lea.sflag [#allocation3], %s163
        %s165 = sand.u32 %s90, 1
        %s166 = smul.addr %s165, 8
        %s167 = scalar_lea.vmem [#allocation2], %s166
        %p168 = scmp.lt.s32.totalorder %s20, 1
        %s169 = scalar_select %p168, %s20, 1
        %p170 = scmp.lt.s32.totalorder %s21, 0
        %s171 = scalar_select %p170, %s21, 0
        %s172 = sadd.s32 %s171, %s169
        %s173 = smul.addr %s172, 8
        %s174 = scalar_lea.vmem %s0, %s173
        %p175 = scmp.lt.s32.totalorder %s20, 1
        %s176 = scalar_select %p175, %s20, 1
        %s177 = smul.addr %s176, 8
        %s178 = scalar_lea.vmem %s1, %s177
        %v179 = vld [vmem:[%s174] sm:$0xff]
        %v180 = vld [vmem:[%s178] sm:$0xff]
        %vm181 = vcmp.ne.s32.totalorder %v180, 1
        %v182 = vlaneseq
        %v183 = vand.u32 %v182, 127
        %184 = vset.pattern.permute.xlu0 0
        %185 = vperm.xlu0 %184, %v180
        %v186 = vpop.permute.xlu0 %185
        %vm187 = vcmp.eq.s32.totalorder %v183, %v186
        %v188 = vsel %vm187, %v179, 0.0
        %vm189 = vcmask 261120
        %v190 = vsel %vm189, %v188, 0.0
        %191 = vadd.xlane.f32.xlu0 %v190
        %v192 = vpop.xlane.xlu0 %191
        %v193 = vsel %vm181, %v192, 0.0
        %vm194 = vcmask 7168
        %v195 = vsel %vm194, %v193, 0.0
        %196 = vadd.xlane.f32.xlu0 %v195
        %v197 = vpop.xlane.xlu0 %196
        %v198 = vrot.slane %v197, 4
        %v199 = vadd.f32 %v197, %v198
        %v200 = vrot.slane %v199, 2
        %v201 = vadd.f32 %v199, %v200
        %v202 = vrot.slane %v201, 1
        %v203 = vadd.f32 %v201, %v202
        %s204 = vtos %v203
        %s205 = ssub.f32 0.0, %s204
        %v206 = vstv %s205
        %v207 = vadd.f32 %v206, 0.0
        %208 = vst [vmem:[%s167] sm:$0xff] %v207
        %s209 = sand.u32 %s90, 1
        %s210 = scalar_lea.sflag [#allocation3], %s209
        %s211 = sand.u32 %s90, 1
        %s212 = smul.addr %s211, 8
        %s213 = scalar_lea.vmem [#allocation2], %s212
        // Predicated region
        $region29: #{tpu_custom_call.1} parent=27 // pred_check
          %p214 = pneg %p100
        $region30: #{tpu_custom_call.1} parent=27 // pred_check_branch
          %216 = sbr.rel (%p214) target = $region32
        $region31: #{tpu_custom_call.1} parent=27 // pred_region
          %s218 = ssub.s32 128, 128
          %219 = vsyncadd %s210, %s218
          %s220 = smul.addr %s20, 128
          %s221 = scalar_lea.hbm %s2, %s220
          %s223 = sshll.u32 %s213, 4
          %s224 = int_to_ptr.vmem [resolvable:$true] %s223
          %226 = dma.vmem_to_hbm [thread:$0]  %s224, 128, %s221, %s210
        $region32: #{tpu_custom_call.1} parent=27 // pred_fallthru
          _
      $region28: #{tpu_custom_call.1} parent=5 // pred_fallthru
        _
      %p227 = scmp.le.s32.totalorder 2, %s11
      // Predicated region
      $region33: #{tpu_custom_call.1} parent=5 // pred_check
        %p228 = pneg %p227
      $region34: #{tpu_custom_call.1} parent=5 // pred_check_branch
        %230 = sbr.rel (%p228) target = $region36
      $region35: #{tpu_custom_call.1} parent=5 // pred_region
        %s231 = ssub.s32 %s11, 2
        // Predicated region
        $region37: #{tpu_custom_call.1} parent=35 // pred_check
          %p232 = pneg %p106
        $region38: #{tpu_custom_call.1} parent=35 // pred_check_branch
          %234 = sbr.rel (%p232) target = $region40
        $region39: #{tpu_custom_call.1} parent=35 // pred_region
          %s235 = sand.u32 %s91, 1
          %s236 = scalar_lea.sflag [#allocation3], %s235
          %s237 = sand.u32 %s91, 1
          %s238 = smul.addr %s237, 8
          %s239 = scalar_lea.vmem [#allocation2], %s238
          %240 = dma.done %s236, 128
        $region40: #{tpu_custom_call.1} parent=35 // pred_fallthru
          _
      $region36: #{tpu_custom_call.1} parent=5 // pred_fallthru
        _
    $region6: #{tpu_custom_call.1} parent=1 // loop_footer
      %s15 = sadd.s32 1, %s11
    $region7: #{tpu_custom_call.1} parent=1 // loop_footer_branch
      %10 = sbr.rel target = $region3
    $region8: #{tpu_custom_call.1} parent=1 // loop_exit
      _
    %241 = vsyncpa [#allocation3], 1
    %s242 = scalar_lea.sflag [#allocation3], 1
    %243 = vsyncpa %s242, 1

</llo_original>
